<compile_context>
chip_gen: v5e
topology: v5e:2x2
jax: 0.10.0
libtpu: 0.0.40
codegen_flags: <defaults>
</compile_context>

<pallas_src>
import numpy as np
import jax
import jax.numpy as jnp
from jax import lax
from jax.experimental import pallas as pl
from jax.experimental.pallas import tpu as pltpu


def rnn_fc_kernel(x_ref, w_ih_ref, w_hh_ref, b_h_ref, w_fc_ref, b_fc_ref,
                  out_ref, hs_scratch):
    """Elman-RNN recurrence + output projection, all VMEM-resident.

    x_ref:     (T, B, I)   time-major input
    w_ih_ref:  (I, H)      = W_ih^T
    w_hh_ref:  (H, H)      = W_hh^T
    b_h_ref:   (1, H)      = b_ih + b_hh
    w_fc_ref:  (H, O)      = W_fc^T
    b_fc_ref:  (1, O)
    out_ref:   (T, B, O)   time-major output
    hs_scratch:(T, B, H)   hidden-state trajectory (VMEM scratch)
    """
    T, B, I = x_ref.shape
    H = w_hh_ref.shape[0]
    O = w_fc_ref.shape[1]

    # --- (1) Hoisted input projection: one batched matmul, one bias broadcast.
    pre = (jnp.dot(x_ref[...].reshape(T * B, I), w_ih_ref[...],
                   preferred_element_type=jnp.float32)
           + b_h_ref[...]).reshape(T, B, H)            # (T, B, H) in vregs

    w_hh = w_hh_ref[...]                               # hoist weight load

    # --- (2)+(4) Serial recurrence: h lives in registers; loop fully unrolled
    # (T is a small static constant, so this is equivalent to unroll=True and
    #  lets MXU push/pop of step t overlap tanh/adds of neighbouring steps).
    h = jnp.zeros((B, H), jnp.float32)
    for t in range(T):
        h = jnp.tanh(pre[t] + jnp.dot(h, w_hh,
                                      preferred_element_type=jnp.float32))
        hs_scratch[t] = h        # trajectory store; not on the h->h critical path

    # --- (3)+(5) Hoisted FC projection + bias, single contiguous store.
    hs = hs_scratch[...].reshape(T * B, H)
    y = (jnp.dot(hs, w_fc_ref[...], preferred_element_type=jnp.float32)
         + b_fc_ref[...])                              # (T*B, O)
    out_ref[...] = y.reshape(T, B, O).astype(out_ref.dtype)


def customized_rnn_forward(x, params):
    """x: (B, T, input_size) float32, batch_first (PyTorch convention)."""
    B, T, I = x.shape
    H = params["w_hh"].shape[0]
    O = params["w_fc"].shape[0]

    # Wrapper-side layout plumbing (negligible at these shapes).
    x_tm = jnp.transpose(x, (1, 0, 2)).astype(jnp.float32)    # (T, B, I)
    w_ih_t = params["w_ih"].T                                  # (I, H)
    w_hh_t = params["w_hh"].T                                  # (H, H)
    w_fc_t = params["w_fc"].T                                  # (H, O)
    b_h = (params["b_ih"] + params["b_hh"]).reshape(1, H)
    b_fc = params["b_fc"].reshape(1, O)

    out_tm = pl.pallas_call(
        rnn_fc_kernel,
        out_shape=jax.ShapeDtypeStruct((T, B, O), jnp.float32),
        grid=(1,),
        in_specs=[
            pl.BlockSpec((T, B, I), lambda i: (0, 0, 0)),
            pl.BlockSpec((I, H), lambda i: (0, 0)),
            pl.BlockSpec((H, H), lambda i: (0, 0)),
            pl.BlockSpec((1, H), lambda i: (0, 0)),
            pl.BlockSpec((H, O), lambda i: (0, 0)),
            pl.BlockSpec((1, O), lambda i: (0, 0)),
        ],
        out_specs=pl.BlockSpec((T, B, O), lambda i: (0, 0, 0)),
        scratch_shapes=[pltpu.VMEM((T, B, H), jnp.float32)],
        compiler_params=pltpu.CompilerParams(
            dimension_semantics=("arbitrary",)),
    )(x_tm, w_ih_t, w_hh_t, b_h, w_fc_t, b_fc)

    return jnp.transpose(out_tm, (1, 0, 2))                   # (B, T, O)


def reference_forward(x, params):
    """Pure-JAX reference matching torch.nn.RNN(batch_first=True) + Linear."""
    B, T, I = x.shape
    H = params["w_hh"].shape[0]

    def step(h, xt):
        h_new = jnp.tanh(xt @ params["w_ih"].T + params["b_ih"]
                         + h @ params["w_hh"].T + params["b_hh"])
        return h_new, h_new

    x_tm = jnp.transpose(x, (1, 0, 2))
    _, hs = lax.scan(step, jnp.zeros((B, H), jnp.float32), x_tm)
    hs = jnp.transpose(hs, (1, 0, 2))                          # (B, T, H)
    return hs @ params["w_fc"].T + params["b_fc"]


def init_params(key, input_size, hidden_size, output_size):
    """Deterministic init mimicking PyTorch's U(-1/sqrt(H), 1/sqrt(H))."""
    ks = jax.random.split(key, 6)
    bound = 1.0 / np.sqrt(hidden_size)
    u = lambda k, shape, b: jax.random.uniform(
        k, shape, jnp.float32, minval=-b, maxval=b)
    return {
        "w_ih": u(ks[0], (hidden_size, input_size), bound),
        "w_hh": u(ks[1], (hidden_size, hidden_size), bound),
        "b_ih": u(ks[2], (hidden_size,), bound),
        "b_hh": u(ks[3], (hidden_size,), bound),
        "w_fc": u(ks[4], (output_size, hidden_size), bound),
        "b_fc": u(ks[5], (output_size,), bound),
    }


if __name__ == "__main__":
    # Module constants: vocabulary of 'apple'+'pple!' -> 5 symbols.
    input_size = 5
    hidden_size = 5
    output_size = 5
    batch = 2
    seq = 8

    key = jax.random.PRNGKey(0)
    k_params, k_x = jax.random.split(key)
    params = init_params(k_params, input_size, hidden_size, output_size)

    # Dense input, shape (B, T, input_size) — batch_first like PyTorch.
    x = jax.random.normal(k_x, (batch, seq, input_size), jnp.float32)

    out = customized_rnn_forward(x, params)
    out = jax.block_until_ready(out)

    ref = jax.block_until_ready(reference_forward(x, params))
    assert out.shape == (batch, seq, output_size), out.shape
    np.testing.assert_allclose(np.asarray(out), np.asarray(ref),
                               rtol=1e-5, atol=1e-5)
    print("KERNEL_OK")
</pallas_src>

<mosaic_0001>
module attributes {stable_mosaic.version = 11 : i64} {
  func.func @rnn_fc_kernel(%arg0: i32, %arg1: memref<8x2x5xf32, #tpu.memory_space<vmem>>, %arg2: memref<5x5xf32, #tpu.memory_space<vmem>>, %arg3: memref<5x5xf32, #tpu.memory_space<vmem>>, %arg4: memref<1x5xf32, #tpu.memory_space<vmem>>, %arg5: memref<5x5xf32, #tpu.memory_space<vmem>>, %arg6: memref<1x5xf32, #tpu.memory_space<vmem>>, %arg7: memref<8x2x5xf32, #tpu.memory_space<vmem>>, %arg8: memref<8x2x5xf32, #tpu.memory_space<vmem>>) attributes {dimension_semantics = [#tpu.dimension_semantics<arbitrary>], iteration_bounds = array<i64: 1>, scalar_prefetch = 0 : i64, scratch_operands = 1 : i64, tpu.core_type = #tpu.core_type<tc>, window_params = [{pipeline_mode = #tpu.pipeline_mode<synchronous>, transform_indices = @transform_0, window_bounds = array<i64: 8, 2, 5>}, {pipeline_mode = #tpu.pipeline_mode<synchronous>, transform_indices = @transform_1, window_bounds = array<i64: 5, 5>}, {pipeline_mode = #tpu.pipeline_mode<synchronous>, transform_indices = @transform_2, window_bounds = array<i64: 5, 5>}, {pipeline_mode = #tpu.pipeline_mode<synchronous>, transform_indices = @transform_3, window_bounds = array<i64: 1, 5>}, {pipeline_mode = #tpu.pipeline_mode<synchronous>, transform_indices = @transform_4, window_bounds = array<i64: 5, 5>}, {pipeline_mode = #tpu.pipeline_mode<synchronous>, transform_indices = @transform_5, window_bounds = array<i64: 1, 5>}, {pipeline_mode = #tpu.pipeline_mode<synchronous>, transform_indices = @transform_6, window_bounds = array<i64: 8, 2, 5>}]} {
    %c0 = arith.constant 0 : index
    %c0_0 = arith.constant 0 : index
    %c0_1 = arith.constant 0 : index
    %0 = vector.load %arg1[%c0, %c0_0, %c0_1] : memref<8x2x5xf32, #tpu.memory_space<vmem>>, vector<8x2x5xf32>
    %1 = vector.shape_cast %0 : vector<8x2x5xf32> to vector<16x5xf32>
    %c0_2 = arith.constant 0 : index
    %c0_3 = arith.constant 0 : index
    %2 = vector.load %arg2[%c0_2, %c0_3] : memref<5x5xf32, #tpu.memory_space<vmem>>, vector<5x5xf32>
    %cst = arith.constant dense<0.000000e+00> : vector<16x5xf32>
    %3 = tpu.matmul %1, %2, %cst {dimension_numbers = #tpu.dot_dimension_numbers<[1], [0], [0], [1], [0, 0, 1, 1], [], []>} : vector<16x5xf32>, vector<5x5xf32>, vector<16x5xf32> -> vector<16x5xf32>
    %c0_4 = arith.constant 0 : index
    %c0_5 = arith.constant 0 : index
    %4 = vector.load %arg4[%c0_4, %c0_5] : memref<1x5xf32, #tpu.memory_space<vmem>>, vector<1x5xf32>
    %5 = vector.broadcast %4 : vector<1x5xf32> to vector<16x5xf32>
    %6 = arith.addf %3, %5 : vector<16x5xf32>
    %7 = vector.shape_cast %6 : vector<16x5xf32> to vector<8x2x5xf32>
    %c0_6 = arith.constant 0 : index
    %c0_7 = arith.constant 0 : index
    %8 = vector.load %arg3[%c0_6, %c0_7] : memref<5x5xf32, #tpu.memory_space<vmem>>, vector<5x5xf32>
    %cst_8 = arith.constant 0.000000e+00 : f32
    %9 = vector.broadcast %cst_8 : f32 to vector<2x5xf32>
    %10 = vector.extract_strided_slice %7 {offsets = [0, 0, 0], sizes = [1, 2, 5], strides = [1, 1, 1]} : vector<8x2x5xf32> to vector<1x2x5xf32>
    %11 = vector.shape_cast %10 : vector<1x2x5xf32> to vector<2x5xf32>
    %cst_9 = arith.constant dense<0.000000e+00> : vector<2x5xf32>
    %12 = tpu.matmul %9, %8, %cst_9 {dimension_numbers = #tpu.dot_dimension_numbers<[1], [0], [0], [1], [0, 0, 1, 1], [], []>} : vector<2x5xf32>, vector<5x5xf32>, vector<2x5xf32> -> vector<2x5xf32>
    %13 = arith.addf %11, %12 : vector<2x5xf32>
    %14 = math.tanh %13 : vector<2x5xf32>
    %c0_10 = arith.constant 0 : index
    %c0_11 = arith.constant 0 : index
    %c0_12 = arith.constant 0 : index
    %15 = vector.load %arg8[%c0_10, %c0_11, %c0_12] : memref<8x2x5xf32, #tpu.memory_space<vmem>>, vector<1x2x5xf32>
    %16 = vector.shape_cast %15 : vector<1x2x5xf32> to vector<2x5xf32>
    %17 = vector.shape_cast %14 : vector<2x5xf32> to vector<1x2x5xf32>
    tpu.vector_store %arg8[%c0_10, %c0_11, %c0_12], %17 {strides = array<i32>} : memref<8x2x5xf32, #tpu.memory_space<vmem>>, vector<1x2x5xf32>,
    %18 = vector.extract_strided_slice %7 {offsets = [1, 0, 0], sizes = [1, 2, 5], strides = [1, 1, 1]} : vector<8x2x5xf32> to vector<1x2x5xf32>
    %19 = vector.shape_cast %18 : vector<1x2x5xf32> to vector<2x5xf32>
    %cst_13 = arith.constant dense<0.000000e+00> : vector<2x5xf32>
    %20 = tpu.matmul %14, %8, %cst_13 {dimension_numbers = #tpu.dot_dimension_numbers<[1], [0], [0], [1], [0, 0, 1, 1], [], []>} : vector<2x5xf32>, vector<5x5xf32>, vector<2x5xf32> -> vector<2x5xf32>
    %21 = arith.addf %19, %20 : vector<2x5xf32>
    %22 = math.tanh %21 : vector<2x5xf32>
    %c1 = arith.constant 1 : index
    %c0_14 = arith.constant 0 : index
    %c0_15 = arith.constant 0 : index
    %23 = vector.load %arg8[%c1, %c0_14, %c0_15] : memref<8x2x5xf32, #tpu.memory_space<vmem>>, vector<1x2x5xf32>
    %24 = vector.shape_cast %23 : vector<1x2x5xf32> to vector<2x5xf32>
    %25 = vector.shape_cast %22 : vector<2x5xf32> to vector<1x2x5xf32>
    tpu.vector_store %arg8[%c1, %c0_14, %c0_15], %25 {strides = array<i32>} : memref<8x2x5xf32, #tpu.memory_space<vmem>>, vector<1x2x5xf32>,
    %26 = vector.extract_strided_slice %7 {offsets = [2, 0, 0], sizes = [1, 2, 5], strides = [1, 1, 1]} : vector<8x2x5xf32> to vector<1x2x5xf32>
    %27 = vector.shape_cast %26 : vector<1x2x5xf32> to vector<2x5xf32>
    %cst_16 = arith.constant dense<0.000000e+00> : vector<2x5xf32>
    %28 = tpu.matmul %22, %8, %cst_16 {dimension_numbers = #tpu.dot_dimension_numbers<[1], [0], [0], [1], [0, 0, 1, 1], [], []>} : vector<2x5xf32>, vector<5x5xf32>, vector<2x5xf32> -> vector<2x5xf32>
    %29 = arith.addf %27, %28 : vector<2x5xf32>
    %30 = math.tanh %29 : vector<2x5xf32>
    %c2 = arith.constant 2 : index
    %c0_17 = arith.constant 0 : index
    %c0_18 = arith.constant 0 : index
    %31 = vector.load %arg8[%c2, %c0_17, %c0_18] : memref<8x2x5xf32, #tpu.memory_space<vmem>>, vector<1x2x5xf32>
    %32 = vector.shape_cast %31 : vector<1x2x5xf32> to vector<2x5xf32>
    %33 = vector.shape_cast %30 : vector<2x5xf32> to vector<1x2x5xf32>
    tpu.vector_store %arg8[%c2, %c0_17, %c0_18], %33 {strides = array<i32>} : memref<8x2x5xf32, #tpu.memory_space<vmem>>, vector<1x2x5xf32>,
    %34 = vector.extract_strided_slice %7 {offsets = [3, 0, 0], sizes = [1, 2, 5], strides = [1, 1, 1]} : vector<8x2x5xf32> to vector<1x2x5xf32>
    %35 = vector.shape_cast %34 : vector<1x2x5xf32> to vector<2x5xf32>
    %cst_19 = arith.constant dense<0.000000e+00> : vector<2x5xf32>
    %36 = tpu.matmul %30, %8, %cst_19 {dimension_numbers = #tpu.dot_dimension_numbers<[1], [0], [0], [1], [0, 0, 1, 1], [], []>} : vector<2x5xf32>, vector<5x5xf32>, vector<2x5xf32> -> vector<2x5xf32>
    %37 = arith.addf %35, %36 : vector<2x5xf32>
    %38 = math.tanh %37 : vector<2x5xf32>
    %c3 = arith.constant 3 : index
    %c0_20 = arith.constant 0 : index
    %c0_21 = arith.constant 0 : index
    %39 = vector.load %arg8[%c3, %c0_20, %c0_21] : memref<8x2x5xf32, #tpu.memory_space<vmem>>, vector<1x2x5xf32>
    %40 = vector.shape_cast %39 : vector<1x2x5xf32> to vector<2x5xf32>
    %41 = vector.shape_cast %38 : vector<2x5xf32> to vector<1x2x5xf32>
    tpu.vector_store %arg8[%c3, %c0_20, %c0_21], %41 {strides = array<i32>} : memref<8x2x5xf32, #tpu.memory_space<vmem>>, vector<1x2x5xf32>,
    %42 = vector.extract_strided_slice %7 {offsets = [4, 0, 0], sizes = [1, 2, 5], strides = [1, 1, 1]} : vector<8x2x5xf32> to vector<1x2x5xf32>
    %43 = vector.shape_cast %42 : vector<1x2x5xf32> to vector<2x5xf32>
    %cst_22 = arith.constant dense<0.000000e+00> : vector<2x5xf32>
    %44 = tpu.matmul %38, %8, %cst_22 {dimension_numbers = #tpu.dot_dimension_numbers<[1], [0], [0], [1], [0, 0, 1, 1], [], []>} : vector<2x5xf32>, vector<5x5xf32>, vector<2x5xf32> -> vector<2x5xf32>
    %45 = arith.addf %43, %44 : vector<2x5xf32>
    %46 = math.tanh %45 : vector<2x5xf32>
    %c4 = arith.constant 4 : index
    %c0_23 = arith.constant 0 : index
    %c0_24 = arith.constant 0 : index
    %47 = vector.load %arg8[%c4, %c0_23, %c0_24] : memref<8x2x5xf32, #tpu.memory_space<vmem>>, vector<1x2x5xf32>
    %48 = vector.shape_cast %47 : vector<1x2x5xf32> to vector<2x5xf32>
    %49 = vector.shape_cast %46 : vector<2x5xf32> to vector<1x2x5xf32>
    tpu.vector_store %arg8[%c4, %c0_23, %c0_24], %49 {strides = array<i32>} : memref<8x2x5xf32, #tpu.memory_space<vmem>>, vector<1x2x5xf32>,
    %50 = vector.extract_strided_slice %7 {offsets = [5, 0, 0], sizes = [1, 2, 5], strides = [1, 1, 1]} : vector<8x2x5xf32> to vector<1x2x5xf32>
    %51 = vector.shape_cast %50 : vector<1x2x5xf32> to vector<2x5xf32>
    %cst_25 = arith.constant dense<0.000000e+00> : vector<2x5xf32>
    %52 = tpu.matmul %46, %8, %cst_25 {dimension_numbers = #tpu.dot_dimension_numbers<[1], [0], [0], [1], [0, 0, 1, 1], [], []>} : vector<2x5xf32>, vector<5x5xf32>, vector<2x5xf32> -> vector<2x5xf32>
    %53 = arith.addf %51, %52 : vector<2x5xf32>
    %54 = math.tanh %53 : vector<2x5xf32>
    %c5 = arith.constant 5 : index
    %c0_26 = arith.constant 0 : index
    %c0_27 = arith.constant 0 : index
    %55 = vector.load %arg8[%c5, %c0_26, %c0_27] : memref<8x2x5xf32, #tpu.memory_space<vmem>>, vector<1x2x5xf32>
    %56 = vector.shape_cast %55 : vector<1x2x5xf32> to vector<2x5xf32>
    %57 = vector.shape_cast %54 : vector<2x5xf32> to vector<1x2x5xf32>
    tpu.vector_store %arg8[%c5, %c0_26, %c0_27], %57 {strides = array<i32>} : memref<8x2x5xf32, #tpu.memory_space<vmem>>, vector<1x2x5xf32>,
    %58 = vector.extract_strided_slice %7 {offsets = [6, 0, 0], sizes = [1, 2, 5], strides = [1, 1, 1]} : vector<8x2x5xf32> to vector<1x2x5xf32>
    %59 = vector.shape_cast %58 : vector<1x2x5xf32> to vector<2x5xf32>
    %cst_28 = arith.constant dense<0.000000e+00> : vector<2x5xf32>
    %60 = tpu.matmul %54, %8, %cst_28 {dimension_numbers = #tpu.dot_dimension_numbers<[1], [0], [0], [1], [0, 0, 1, 1], [], []>} : vector<2x5xf32>, vector<5x5xf32>, vector<2x5xf32> -> vector<2x5xf32>
    %61 = arith.addf %59, %60 : vector<2x5xf32>
    %62 = math.tanh %61 : vector<2x5xf32>
    %c6 = arith.constant 6 : index
    %c0_29 = arith.constant 0 : index
    %c0_30 = arith.constant 0 : index
    %63 = vector.load %arg8[%c6, %c0_29, %c0_30] : memref<8x2x5xf32, #tpu.memory_space<vmem>>, vector<1x2x5xf32>
    %64 = vector.shape_cast %63 : vector<1x2x5xf32> to vector<2x5xf32>
    %65 = vector.shape_cast %62 : vector<2x5xf32> to vector<1x2x5xf32>
    tpu.vector_store %arg8[%c6, %c0_29, %c0_30], %65 {strides = array<i32>} : memref<8x2x5xf32, #tpu.memory_space<vmem>>, vector<1x2x5xf32>,
    %66 = vector.extract_strided_slice %7 {offsets = [7, 0, 0], sizes = [1, 2, 5], strides = [1, 1, 1]} : vector<8x2x5xf32> to vector<1x2x5xf32>
    %67 = vector.shape_cast %66 : vector<1x2x5xf32> to vector<2x5xf32>
    %cst_31 = arith.constant dense<0.000000e+00> : vector<2x5xf32>
    %68 = tpu.matmul %62, %8, %cst_31 {dimension_numbers = #tpu.dot_dimension_numbers<[1], [0], [0], [1], [0, 0, 1, 1], [], []>} : vector<2x5xf32>, vector<5x5xf32>, vector<2x5xf32> -> vector<2x5xf32>
    %69 = arith.addf %67, %68 : vector<2x5xf32>
    %70 = math.tanh %69 : vector<2x5xf32>
    %c7 = arith.constant 7 : index
    %c0_32 = arith.constant 0 : index
    %c0_33 = arith.constant 0 : index
    %71 = vector.load %arg8[%c7, %c0_32, %c0_33] : memref<8x2x5xf32, #tpu.memory_space<vmem>>, vector<1x2x5xf32>
    %72 = vector.shape_cast %71 : vector<1x2x5xf32> to vector<2x5xf32>
    %73 = vector.shape_cast %70 : vector<2x5xf32> to vector<1x2x5xf32>
    tpu.vector_store %arg8[%c7, %c0_32, %c0_33], %73 {strides = array<i32>} : memref<8x2x5xf32, #tpu.memory_space<vmem>>, vector<1x2x5xf32>,
    %c0_34 = arith.constant 0 : index
    %c0_35 = arith.constant 0 : index
    %c0_36 = arith.constant 0 : index
    %74 = vector.load %arg8[%c0_34, %c0_35, %c0_36] : memref<8x2x5xf32, #tpu.memory_space<vmem>>, vector<8x2x5xf32>
    %75 = vector.shape_cast %74 : vector<8x2x5xf32> to vector<16x5xf32>
    %c0_37 = arith.constant 0 : index
    %c0_38 = arith.constant 0 : index
    %76 = vector.load %arg5[%c0_37, %c0_38] : memref<5x5xf32, #tpu.memory_space<vmem>>, vector<5x5xf32>
    %cst_39 = arith.constant dense<0.000000e+00> : vector<16x5xf32>
    %77 = tpu.matmul %75, %76, %cst_39 {dimension_numbers = #tpu.dot_dimension_numbers<[1], [0], [0], [1], [0, 0, 1, 1], [], []>} : vector<16x5xf32>, vector<5x5xf32>, vector<16x5xf32> -> vector<16x5xf32>
    %c0_40 = arith.constant 0 : index
    %c0_41 = arith.constant 0 : index
    %78 = vector.load %arg6[%c0_40, %c0_41] : memref<1x5xf32, #tpu.memory_space<vmem>>, vector<1x5xf32>
    %79 = vector.broadcast %78 : vector<1x5xf32> to vector<16x5xf32>
    %80 = arith.addf %77, %79 : vector<16x5xf32>
    %81 = vector.shape_cast %80 : vector<16x5xf32> to vector<8x2x5xf32>
    %c0_42 = arith.constant 0 : index
    %c0_43 = arith.constant 0 : index
    %c0_44 = arith.constant 0 : index
    %82 = vector.load %arg7[%c0_42, %c0_43, %c0_44] : memref<8x2x5xf32, #tpu.memory_space<vmem>>, vector<8x2x5xf32>
    tpu.vector_store %arg7[%c0_42, %c0_43, %c0_44], %81 {strides = array<i32>} : memref<8x2x5xf32, #tpu.memory_space<vmem>>, vector<8x2x5xf32>,
    return
  }
  func.func @transform_0(%arg0: i32) -> (i32, i32, i32) {
    %c0_i32 = arith.constant 0 : i32
    %c0_i32_0 = arith.constant 0 : i32
    %c0_i32_1 = arith.constant 0 : i32
    %c0_i32_2 = arith.constant 0 : i32
    return %c0_i32, %c0_i32_0, %c0_i32_1 : i32, i32, i32
  }
  func.func @transform_1(%arg0: i32) -> (i32, i32) {
    %c0_i32 = arith.constant 0 : i32
    %c0_i32_0 = arith.constant 0 : i32
    %c0_i32_1 = arith.constant 0 : i32
    return %c0_i32, %c0_i32_0 : i32, i32
  }
  func.func @transform_2(%arg0: i32) -> (i32, i32) {
    %c0_i32 = arith.constant 0 : i32
    %c0_i32_0 = arith.constant 0 : i32
    %c0_i32_1 = arith.constant 0 : i32
    return %c0_i32, %c0_i32_0 : i32, i32
  }
  func.func @transform_3(%arg0: i32) -> (i32, i32) {
    %c0_i32 = arith.constant 0 : i32
    %c0_i32_0 = arith.constant 0 : i32
    %c0_i32_1 = arith.constant 0 : i32
    return %c0_i32, %c0_i32_0 : i32, i32
  }
  func.func @transform_4(%arg0: i32) -> (i32, i32) {
    %c0_i32 = arith.constant 0 : i32
    %c0_i32_0 = arith.constant 0 : i32
    %c0_i32_1 = arith.constant 0 : i32
    return %c0_i32, %c0_i32_0 : i32, i32
  }
  func.func @transform_5(%arg0: i32) -> (i32, i32) {
    %c0_i32 = arith.constant 0 : i32
    %c0_i32_0 = arith.constant 0 : i32
    %c0_i32_1 = arith.constant 0 : i32
    return %c0_i32, %c0_i32_0 : i32, i32
  }
  func.func @transform_6(%arg0: i32) -> (i32, i32, i32) {
    %c0_i32 = arith.constant 0 : i32
    %c0_i32_0 = arith.constant 0 : i32
    %c0_i32_1 = arith.constant 0 : i32
    %c0_i32_2 = arith.constant 0 : i32
    return %c0_i32, %c0_i32_0, %c0_i32_1 : i32, i32, i32
  }
}

</mosaic_0001>

<llo_original>
// kernel: tpu_custom_call.1
$region0: #{tpu_custom_call.1}
  #allocation0 [shape = 'u32[]', space=smem, size = 0x4, offset = 0x4, fixed_abs, tag = 'smem constant byte address 0x4 - core index']
  #allocation1 [shape = 'u32[72,128]{1,0:T(1,128)}', space=vmem, size = 0x9000, scoped, tag = 'internal scratch']
  #allocation2 [shape = 'f32[8,2,5]{2,1,0:T(2,128)}', space=vmem, size = 0x2000, scoped, tag = 'scratch operand']
  %s0 = inlined_call_operand.vmem [shape: f32[8,2,5], index: 0, kind: input, shape index: {}]
  %s1 = inlined_call_operand.vmem [shape: f32[5,5], index: 1, kind: input, shape index: {}]
  %s2 = inlined_call_operand.vmem [shape: f32[5,5], index: 2, kind: input, shape index: {}]
  %s3 = inlined_call_operand.vmem [shape: f32[1,5], index: 3, kind: input, shape index: {}]
  %s4 = inlined_call_operand.vmem [shape: f32[5,5], index: 4, kind: input, shape index: {}]
  %s5 = inlined_call_operand.vmem [shape: f32[1,5], index: 5, kind: input, shape index: {}]
  %s6 = inlined_call_operand.vmem [shape: f32[8,2,5], index: 6, kind: output, shape index: {}]
  %s7 = sld [smem:[#allocation0]]
  $region34: #{tpu_custom_call.1} parent=0
    _
  %s9 = ssub.s32 1, %s7
  %s10 = scalar_select 0, %s9, %s7
  // Predicated region
  $region2: #{tpu_custom_call.1} parent=0 // pred_check
    _
  $region3: #{tpu_custom_call.1} parent=0 // pred_check_branch
    %12 = sbr.rel (0) target = $region5
  $region4: #{tpu_custom_call.1} parent=0 // pred_region
    _
  $region5: #{tpu_custom_call.1} parent=0 // pred_fallthru
    _
  // Predicated region
  $region6: #{tpu_custom_call.1} parent=0 // pred_check
    _
  $region7: #{tpu_custom_call.1} parent=0 // pred_check_branch
    %14 = sbr.rel (0) target = $region9
  $region8: #{tpu_custom_call.1} parent=0 // pred_region
    _
  $region9: #{tpu_custom_call.1} parent=0 // pred_fallthru
    _
  // Predicated region
  $region10: #{tpu_custom_call.1} parent=0 // pred_check
    _
  $region11: #{tpu_custom_call.1} parent=0 // pred_check_branch
    %16 = sbr.rel (0) target = $region13
  $region12: #{tpu_custom_call.1} parent=0 // pred_region
    _
  $region13: #{tpu_custom_call.1} parent=0 // pred_fallthru
    _
  // Predicated region
  $region14: #{tpu_custom_call.1} parent=0 // pred_check
    _
  $region15: #{tpu_custom_call.1} parent=0 // pred_check_branch
    %18 = sbr.rel (0) target = $region17
  $region16: #{tpu_custom_call.1} parent=0 // pred_region
    _
  $region17: #{tpu_custom_call.1} parent=0 // pred_fallthru
    _
  // Predicated region
  $region18: #{tpu_custom_call.1} parent=0 // pred_check
    _
  $region19: #{tpu_custom_call.1} parent=0 // pred_check_branch
    %20 = sbr.rel (0) target = $region21
  $region20: #{tpu_custom_call.1} parent=0 // pred_region
    _
  $region21: #{tpu_custom_call.1} parent=0 // pred_fallthru
    _
  // Predicated region
  $region22: #{tpu_custom_call.1} parent=0 // pred_check
    _
  $region23: #{tpu_custom_call.1} parent=0 // pred_check_branch
    %22 = sbr.rel (0) target = $region25
  $region24: #{tpu_custom_call.1} parent=0 // pred_region
    _
  $region25: #{tpu_custom_call.1} parent=0 // pred_fallthru
    _
  %v23 = vld [vmem:[%s0] sm:$0x3]
  %v24 = vld [vmem:[%s0 + $0x2] sm:$0x3]
  %v25 = vld [vmem:[%s0 + $0x4] sm:$0x3]
  %v26 = vld [vmem:[%s0 + $0x6] sm:$0x3]
  %v27 = vld [vmem:[%s0 + $0x8] sm:$0x3]
  %v28 = vld [vmem:[%s0 + $0xa] sm:$0x3]
  %v29 = vld [vmem:[%s0 + $0xc] sm:$0x3]
  %v30 = vld [vmem:[%s0 + $0xe] sm:$0x3]
  %v31 = vld [vmem:[%s1] sm:$0x1f]
  %v32 = vld [vmem:[%s3] sm:$0x1]
  %v34 = vperm.slane %v32, 0
  %44 = vst [vmem:[#allocation1] ss:$4 sm:$0xff] %v23
  %s45 = scalar_lea.vmem [#allocation1], 1
  %46 = vst [vmem:[%s45] ss:$4 sm:$0xff] %v24
  %s47 = scalar_lea.vmem [#allocation1], 2
  %48 = vst [vmem:[%s47] ss:$4 sm:$0xff] %v25
  %s49 = scalar_lea.vmem [#allocation1], 3
  %50 = vst [vmem:[%s49] ss:$4 sm:$0xff] %v26
  %s51 = scalar_lea.vmem [#allocation1], 32
  %52 = vst [vmem:[%s51] ss:$4 sm:$0xff] %v27
  %s53 = scalar_lea.vmem [#allocation1], 33
  %54 = vst [vmem:[%s53] ss:$4 sm:$0xff] %v28
  %s55 = scalar_lea.vmem [#allocation1], 34
  %56 = vst [vmem:[%s55] ss:$4 sm:$0xff] %v29
  %s57 = scalar_lea.vmem [#allocation1], 35
  %58 = vst [vmem:[%s57] ss:$4 sm:$0xff] %v30
  %v59 = vld.sshfl [vmem:[#allocation1] sm:$0xff pattern:$0x73625140]
  %v60 = vld.sshfl [vmem:[#allocation1 + $0x20] sm:$0xff pattern:$0x73625140]
  %vm61 = vcmask 39936
  %v62 = vsel %vm61, %v59, 0
  %v64 = vsel %vm61, %v60, 0
  %vm66 = vcmask 1044480
  %v68 = vsel %vm66, %v31, 0
  %70 = vmatpush.msra.mxu0 0.0
  %71 = vmatpush.msra.mxu0 0.0
  %72 = vmatpush.msra.mxu0 0.0
  %73 = vmatpush.msra.mxu0 0.0
  %74 = vmatpush.msra.mxu0 0.0
  %75 = vmatpush.msra.mxu0 0.0
  %76 = vmatpush.msra.mxu0 0.0
  %77 = vmatpush.msra.mxu0 0.0
  %78 = vmatpush.msra.mxu0 0.0
  %79 = vmatpush.msra.mxu0 0.0
  %80 = vmatpush.msra.mxu0 0.0
  %81 = vmatpush.msra.mxu0 0.0
  %82 = vmatpush.msra.mxu0 0.0
  %83 = vmatpush.msra.mxu0 0.0
  %84 = vmatpush.msra.mxu0 0.0
  %85 = vmatpush.msra.mxu0 %v68
  %86 = vmatmul.f32.gmra.mxu0 %v62
  %v87 = vpop.f32.mrf.mxu0
  %v88 = vadd.f32 %v34, %v87
  %89 = vmatmul.f32.gmra.mxu0 %v64
  %v90 = vpop.f32.mrf.mxu0
  %v91 = vadd.f32 %v34, %v90
  %92 = vdwg.mxu0
  %v95 = vrot.slane %v88, 2
  %v96 = vrot.slane %v88, 4
  %v97 = vrot.slane %v88, 6
  %v98 = vrot.slane %v91, 2
  %v99 = vrot.slane %v91, 4
  %v100 = vrot.slane %v91, 6
  %v107 = vld [vmem:[%s2] sm:$0x1f]
  %v109 = vsel %vm61, 0.0, 0
  %v112 = vsel %vm66, %v107, 0
  %114 = vmatpush.msra.mxu0 0.0
  %115 = vmatpush.msra.mxu0 0.0
  %116 = vmatpush.msra.mxu0 0.0
  %117 = vmatpush.msra.mxu0 0.0
  %118 = vmatpush.msra.mxu0 0.0
  %119 = vmatpush.msra.mxu0 0.0
  %120 = vmatpush.msra.mxu0 0.0
  %121 = vmatpush.msra.mxu0 0.0
  %122 = vmatpush.msra.mxu0 0.0
  %123 = vmatpush.msra.mxu0 0.0
  %124 = vmatpush.msra.mxu0 0.0
  %125 = vmatpush.msra.mxu0 0.0
  %126 = vmatpush.msra.mxu0 0.0
  %127 = vmatpush.msra.mxu0 0.0
  %128 = vmatpush.msra.mxu0 0.0
  %129 = vmatpush.msra.mxu0 %v112
  %130 = vmatmul.f32.gmra.mxu0 %v109
  %v131 = vpop.f32.mrf.mxu0
  %v132 = vadd.f32 0.0, %v131
  %133 = vdwg.mxu0
  %v134 = vadd.f32 %v88, %v132
  %v135 = vtanh.pop %v134
  %vm136 = vcmask 33792
  %137 = vst.msk [vmem:[#allocation2] sm:$0x3] %vm136, %v135
  %v139 = vsel %vm61, %v135, 0
  %141 = vmatpush.msra.mxu0 0.0
  %142 = vmatpush.msra.mxu0 0.0
  %143 = vmatpush.msra.mxu0 0.0
  %144 = vmatpush.msra.mxu0 0.0
  %145 = vmatpush.msra.mxu0 0.0
  %146 = vmatpush.msra.mxu0 0.0
  %147 = vmatpush.msra.mxu0 0.0
  %148 = vmatpush.msra.mxu0 0.0
  %149 = vmatpush.msra.mxu0 0.0
  %150 = vmatpush.msra.mxu0 0.0
  %151 = vmatpush.msra.mxu0 0.0
  %152 = vmatpush.msra.mxu0 0.0
  %153 = vmatpush.msra.mxu0 0.0
  %154 = vmatpush.msra.mxu0 0.0
  %155 = vmatpush.msra.mxu0 0.0
  %156 = vmatpush.msra.mxu0 %v112
  %157 = vmatmul.f32.gmra.mxu0 %v139
  %v158 = vpop.f32.mrf.mxu0
  %v159 = vadd.f32 0.0, %v158
  %160 = vdwg.mxu0
  %v161 = vadd.f32 %v95, %v159
  %v162 = vtanh.pop %v161
  %s163 = scalar_lea.vmem [#allocation2], 2
  %164 = vst.msk [vmem:[%s163] sm:$0x3] %vm136, %v162
  %v166 = vsel %vm61, %v162, 0
  %168 = vmatpush.msra.mxu0 0.0
  %169 = vmatpush.msra.mxu0 0.0
  %170 = vmatpush.msra.mxu0 0.0
  %171 = vmatpush.msra.mxu0 0.0
  %172 = vmatpush.msra.mxu0 0.0
  %173 = vmatpush.msra.mxu0 0.0
  %174 = vmatpush.msra.mxu0 0.0
  %175 = vmatpush.msra.mxu0 0.0
  %176 = vmatpush.msra.mxu0 0.0
  %177 = vmatpush.msra.mxu0 0.0
  %178 = vmatpush.msra.mxu0 0.0
  %179 = vmatpush.msra.mxu0 0.0
  %180 = vmatpush.msra.mxu0 0.0
  %181 = vmatpush.msra.mxu0 0.0
  %182 = vmatpush.msra.mxu0 0.0
  %183 = vmatpush.msra.mxu0 %v112
  %184 = vmatmul.f32.gmra.mxu0 %v166
  %v185 = vpop.f32.mrf.mxu0
  %v186 = vadd.f32 0.0, %v185
  %187 = vdwg.mxu0
  %v188 = vadd.f32 %v96, %v186
  %v189 = vtanh.pop %v188
  %s190 = scalar_lea.vmem [#allocation2], 4
  %191 = vst.msk [vmem:[%s190] sm:$0x3] %vm136, %v189
  %v193 = vsel %vm61, %v189, 0
  %195 = vmatpush.msra.mxu0 0.0
  %196 = vmatpush.msra.mxu0 0.0
  %197 = vmatpush.msra.mxu0 0.0
  %198 = vmatpush.msra.mxu0 0.0
  %199 = vmatpush.msra.mxu0 0.0
  %200 = vmatpush.msra.mxu0 0.0
  %201 = vmatpush.msra.mxu0 0.0
  %202 = vmatpush.msra.mxu0 0.0
  %203 = vmatpush.msra.mxu0 0.0
  %204 = vmatpush.msra.mxu0 0.0
  %205 = vmatpush.msra.mxu0 0.0
  %206 = vmatpush.msra.mxu0 0.0
  %207 = vmatpush.msra.mxu0 0.0
  %208 = vmatpush.msra.mxu0 0.0
  %209 = vmatpush.msra.mxu0 0.0
  %210 = vmatpush.msra.mxu0 %v112
  %211 = vmatmul.f32.gmra.mxu0 %v193
  %v212 = vpop.f32.mrf.mxu0
  %v213 = vadd.f32 0.0, %v212
  %214 = vdwg.mxu0
  %v215 = vadd.f32 %v97, %v213
  %v216 = vtanh.pop %v215
  %s217 = scalar_lea.vmem [#allocation2], 6
  %218 = vst.msk [vmem:[%s217] sm:$0x3] %vm136, %v216
  %v220 = vsel %vm61, %v216, 0
  %222 = vmatpush.msra.mxu0 0.0
  %223 = vmatpush.msra.mxu0 0.0
  %224 = vmatpush.msra.mxu0 0.0
  %225 = vmatpush.msra.mxu0 0.0
  %226 = vmatpush.msra.mxu0 0.0
  %227 = vmatpush.msra.mxu0 0.0
  %228 = vmatpush.msra.mxu0 0.0
  %229 = vmatpush.msra.mxu0 0.0
  %230 = vmatpush.msra.mxu0 0.0
  %231 = vmatpush.msra.mxu0 0.0
  %232 = vmatpush.msra.mxu0 0.0
  %233 = vmatpush.msra.mxu0 0.0
  %234 = vmatpush.msra.mxu0 0.0
  %235 = vmatpush.msra.mxu0 0.0
  %236 = vmatpush.msra.mxu0 0.0
  %237 = vmatpush.msra.mxu0 %v112
  %238 = vmatmul.f32.gmra.mxu0 %v220
  %v239 = vpop.f32.mrf.mxu0
  %v240 = vadd.f32 0.0, %v239
  %241 = vdwg.mxu0
  %v242 = vadd.f32 %v91, %v240
  %v243 = vtanh.pop %v242
  %s244 = scalar_lea.vmem [#allocation2], 8
  %245 = vst.msk [vmem:[%s244] sm:$0x3] %vm136, %v243
  %v247 = vsel %vm61, %v243, 0
  %249 = vmatpush.msra.mxu0 0.0
  %250 = vmatpush.msra.mxu0 0.0
  %251 = vmatpush.msra.mxu0 0.0
  %252 = vmatpush.msra.mxu0 0.0
  %253 = vmatpush.msra.mxu0 0.0
  %254 = vmatpush.msra.mxu0 0.0
  %255 = vmatpush.msra.mxu0 0.0
  %256 = vmatpush.msra.mxu0 0.0
  %257 = vmatpush.msra.mxu0 0.0
  %258 = vmatpush.msra.mxu0 0.0
  %259 = vmatpush.msra.mxu0 0.0
  %260 = vmatpush.msra.mxu0 0.0
  %261 = vmatpush.msra.mxu0 0.0
  %262 = vmatpush.msra.mxu0 0.0
  %263 = vmatpush.msra.mxu0 0.0
  %264 = vmatpush.msra.mxu0 %v112
  %265 = vmatmul.f32.gmra.mxu0 %v247
  %v266 = vpop.f32.mrf.mxu0
  %v267 = vadd.f32 0.0, %v266
  %268 = vdwg.mxu0
  %v269 = vadd.f32 %v98, %v267
  %v270 = vtanh.pop %v269
  %s271 = scalar_lea.vmem [#allocation2], 10
  %272 = vst.msk [vmem:[%s271] sm:$0x3] %vm136, %v270
  %v274 = vsel %vm61, %v270, 0
  %276 = vmatpush.msra.mxu0 0.0
  %277 = vmatpush.msra.mxu0 0.0
  %278 = vmatpush.msra.mxu0 0.0
  %279 = vmatpush.msra.mxu0 0.0
  %280 = vmatpush.msra.mxu0 0.0
  %281 = vmatpush.msra.mxu0 0.0
  %282 = vmatpush.msra.mxu0 0.0
  %283 = vmatpush.msra.mxu0 0.0
  %284 = vmatpush.msra.mxu0 0.0
  %285 = vmatpush.msra.mxu0 0.0
  %286 = vmatpush.msra.mxu0 0.0
  %287 = vmatpush.msra.mxu0 0.0
  %288 = vmatpush.msra.mxu0 0.0
  %289 = vmatpush.msra.mxu0 0.0
  %290 = vmatpush.msra.mxu0 0.0
  %291 = vmatpush.msra.mxu0 %v112
  %292 = vmatmul.f32.gmra.mxu0 %v274
  %v293 = vpop.f32.mrf.mxu0
  %v294 = vadd.f32 0.0, %v293
  %295 = vdwg.mxu0
  %v296 = vadd.f32 %v99, %v294
  %v297 = vtanh.pop %v296
  %s298 = scalar_lea.vmem [#allocation2], 12
  %299 = vst.msk [vmem:[%s298] sm:$0x3] %vm136, %v297
  %v301 = vsel %vm61, %v297, 0
  %303 = vmatpush.msra.mxu0 0.0
  %304 = vmatpush.msra.mxu0 0.0
  %305 = vmatpush.msra.mxu0 0.0
  %306 = vmatpush.msra.mxu0 0.0
  %307 = vmatpush.msra.mxu0 0.0
  %308 = vmatpush.msra.mxu0 0.0
  %309 = vmatpush.msra.mxu0 0.0
  %310 = vmatpush.msra.mxu0 0.0
  %311 = vmatpush.msra.mxu0 0.0
  %312 = vmatpush.msra.mxu0 0.0
  %313 = vmatpush.msra.mxu0 0.0
  %314 = vmatpush.msra.mxu0 0.0
  %315 = vmatpush.msra.mxu0 0.0
  %316 = vmatpush.msra.mxu0 0.0
  %317 = vmatpush.msra.mxu0 0.0
  %318 = vmatpush.msra.mxu0 %v112
  %319 = vmatmul.f32.gmra.mxu0 %v301
  %v320 = vpop.f32.mrf.mxu0
  %v321 = vadd.f32 0.0, %v320
  %322 = vdwg.mxu0
  %v323 = vadd.f32 %v100, %v321
  %v324 = vtanh.pop %v323
  %s325 = scalar_lea.vmem [#allocation2], 14
  %326 = vst.msk [vmem:[%s325] sm:$0x3] %vm136, %v324
  %v327 = vld [vmem:[#allocation2] sm:$0x3]
  %v328 = vld [vmem:[#allocation2 + $0x2] sm:$0x3]
  %v329 = vld [vmem:[#allocation2 + $0x4] sm:$0x3]
  %v330 = vld [vmem:[#allocation2 + $0x6] sm:$0x3]
  %v331 = vld [vmem:[#allocation2 + $0x8] sm:$0x3]
  %v332 = vld [vmem:[#allocation2 + $0xa] sm:$0x3]
  %v333 = vld [vmem:[#allocation2 + $0xc] sm:$0x3]
  %v334 = vld [vmem:[#allocation2 + $0xe] sm:$0x3]
  %v335 = vld [vmem:[%s4] sm:$0x1f]
  %v336 = vld [vmem:[%s5] sm:$0x1]
  %v338 = vperm.slane %v336, 0
  %348 = vst [vmem:[#allocation1] ss:$4 sm:$0xff] %v327
  %s349 = scalar_lea.vmem [#allocation1], 1
  %350 = vst [vmem:[%s349] ss:$4 sm:$0xff] %v328
  %s351 = scalar_lea.vmem [#allocation1], 2
  %352 = vst [vmem:[%s351] ss:$4 sm:$0xff] %v329
  %s353 = scalar_lea.vmem [#allocation1], 3
  %354 = vst [vmem:[%s353] ss:$4 sm:$0xff] %v330
  %s355 = scalar_lea.vmem [#allocation1], 32
  %356 = vst [vmem:[%s355] ss:$4 sm:$0xff] %v331
  %s357 = scalar_lea.vmem [#allocation1], 33
  %358 = vst [vmem:[%s357] ss:$4 sm:$0xff] %v332
  %s359 = scalar_lea.vmem [#allocation1], 34
  %360 = vst [vmem:[%s359] ss:$4 sm:$0xff] %v333
  %s361 = scalar_lea.vmem [#allocation1], 35
  %362 = vst [vmem:[%s361] ss:$4 sm:$0xff] %v334
  %v363 = vld.sshfl [vmem:[#allocation1] sm:$0xff pattern:$0x73625140]
  %v364 = vld.sshfl [vmem:[#allocation1 + $0x20] sm:$0xff pattern:$0x73625140]
  %v365 = vsel %vm61, %v363, 0
  %v367 = vsel %vm61, %v364, 0
  %v370 = vsel %vm66, %v335, 0
  %372 = vmatpush.msra.mxu0 0.0
  %373 = vmatpush.msra.mxu0 0.0
  %374 = vmatpush.msra.mxu0 0.0
  %375 = vmatpush.msra.mxu0 0.0
  %376 = vmatpush.msra.mxu0 0.0
  %377 = vmatpush.msra.mxu0 0.0
  %378 = vmatpush.msra.mxu0 0.0
  %379 = vmatpush.msra.mxu0 0.0
  %380 = vmatpush.msra.mxu0 0.0
  %381 = vmatpush.msra.mxu0 0.0
  %382 = vmatpush.msra.mxu0 0.0
  %383 = vmatpush.msra.mxu0 0.0
  %384 = vmatpush.msra.mxu0 0.0
  %385 = vmatpush.msra.mxu0 0.0
  %386 = vmatpush.msra.mxu0 0.0
  %387 = vmatpush.msra.mxu0 %v370
  %388 = vmatmul.f32.gmra.mxu0 %v365
  %v389 = vpop.f32.mrf.mxu0
  %v390 = vadd.f32 %v338, %v389
  %391 = vmatmul.f32.gmra.mxu0 %v367
  %v392 = vpop.f32.mrf.mxu0
  %v393 = vadd.f32 %v338, %v392
  %394 = vdwg.mxu0
  %v397 = vrot.slane %v390, 2
  %v398 = vrot.slane %v390, 4
  %v399 = vrot.slane %v390, 6
  %v400 = vrot.slane %v393, 2
  %v401 = vrot.slane %v393, 4
  %v402 = vrot.slane %v393, 6
  %409 = vst.msk [vmem:[%s6] sm:$0x3] %vm136, %v390
  %410 = vst.msk [vmem:[%s6 + $0x2] sm:$0x3] %vm136, %v397
  %411 = vst.msk [vmem:[%s6 + $0x4] sm:$0x3] %vm136, %v398
  %412 = vst.msk [vmem:[%s6 + $0x6] sm:$0x3] %vm136, %v399
  %413 = vst.msk [vmem:[%s6 + $0x8] sm:$0x3] %vm136, %v393
  %414 = vst.msk [vmem:[%s6 + $0xa] sm:$0x3] %vm136, %v400
  %415 = vst.msk [vmem:[%s6 + $0xc] sm:$0x3] %vm136, %v401
  %416 = vst.msk [vmem:[%s6 + $0xe] sm:$0x3] %vm136, %v402
  // Predicated region
  $region26: #{tpu_custom_call.1} parent=0 // pred_check
    _
  $region27: #{tpu_custom_call.1} parent=0 // pred_check_branch
    %418 = sbr.rel (0) target = $region29
  $region28: #{tpu_custom_call.1} parent=0 // pred_region
    _
  $region29: #{tpu_custom_call.1} parent=0 // pred_fallthru
    _
  // Predicated region
  $region30: #{tpu_custom_call.1} parent=0 // pred_check
    _
  $region31: #{tpu_custom_call.1} parent=0 // pred_check_branch
    %420 = sbr.rel (0) target = $region33
  $region32: #{tpu_custom_call.1} parent=0 // pred_region
    _
  $region33: #{tpu_custom_call.1} parent=0 // pred_fallthru
    _

</llo_original>
